<compile_context>
chip_gen: v5e
topology: v5e:2x2
jax: 0.10.0
libtpu: 0.0.40
codegen_flags: <defaults>
</compile_context>

<pallas_src>
import functools

import jax
import jax.numpy as jnp
from jax import lax
from jax.experimental import pallas as pl
from jax.experimental.pallas import tpu as pltpu

GEM_P = 3.0
GEM_EPS = 1e-6
COMPUTE_DTYPE = jnp.bfloat16   # MXU operand dtype; accumulation is always f32.


def _round_up(x, m):
    return (x + m - 1) // m * m


def _vmem_budget_bytes():
    """(per-tile working-set budget, vmem_limit_bytes) sized per generation."""
    cap = 128 * 1024 * 1024
    try:
        cap = int(getattr(pltpu.get_tpu_info(), "vmem_capacity_bytes", cap))
    except Exception:
        pass
    if cap <= 64 * 1024 * 1024:                      # v7x: 64 MiB per TC
        return 16 * 1024 * 1024, 48 * 1024 * 1024
    return 24 * 1024 * 1024, 64 * 1024 * 1024        # v5e / v6e: 128 MiB


def _pick_row_tile(h, w, kp, cfp, ncp, budget_bytes):
    """Largest divisor of H whose full VMEM footprint fits the budget."""
    const_bytes = (2 * kp * cfp * 2        # conv weight (bf16, double-buffered)
                   + 2 * 8 * cfp * 4       # conv bias   (f32, sublane-padded)
                   + 2 * cfp * ncp * 4     # fc weight   (f32, double-buffered)
                   + 2 * 8 * ncp * 4       # fc bias
                   + 8 * cfp * 4           # accumulator scratch
                   + 2 * 8 * ncp * 4)      # output block
    for th in range(h, 0, -1):
        if h % th:
            continue
        x_bytes = 2 * th * w * kp * 2      # double-buffered bf16 patch tile
        conv_bytes = th * w * cfp * 4      # f32 conv temp (x3 for cube/reduce temps)
        if const_bytes + x_bytes + 3 * conv_bytes <= budget_bytes:
            return th
    return 1


# ---------------------------------------------------------------------------
# Fused kernel: conv3x3 (single folded matmul) + bias + ReLU + clamp + x^p
# accumulation; on the last spatial step: GeM normalization + Linear.
# ---------------------------------------------------------------------------
def _fused_kernel(x_ref, w_ref, cb_ref, fcw_ref, fcb_ref, o_ref, acc_ref,
                  *, hw_total):
    t = pl.program_id(1)

    @pl.when(t == 0)
    def _():
        acc_ref[...] = jnp.zeros_like(acc_ref)

    # One lane-dense MXU matmul: (TH*W, Kp) bf16 x (Kp, Cfp) bf16 -> f32.
    conv = jnp.dot(x_ref[0], w_ref[...], preferred_element_type=jnp.float32)
    conv = conv + cb_ref[...]                 # bias (f32)
    conv = jnp.maximum(conv, GEM_EPS)         # ReLU + clamp(min=eps) fused
    # GeM numerator: accumulate sum over spatial positions of x^p (p = 3).
    acc_ref[...] += jnp.sum(conv * conv * conv, axis=0, keepdims=True)

    @pl.when(t == pl.num_programs(1) - 1)
    def _():
        m = acc_ref[...] * (1.0 / hw_total)          # spatial mean
        m = jnp.maximum(m, 1e-30)                    # guard log(0)
        pooled = jnp.exp(jnp.log(m) * (1.0 / GEM_P))  # m ** (1/p), f32
        out = jnp.dot(pooled, fcw_ref[...],
                      preferred_element_type=jnp.float32) + fcb_ref[...]
        o_ref[...] = out.reshape(o_ref.shape)


@functools.partial(jax.jit, static_argnames=("n_classes", "row_tile"))
def gemnet_forward(x_nhwc, conv_w, conv_b, fc_w, fc_b, n_classes,
                   row_tile=None):
    """x_nhwc: (N, H, W, Cin); conv_w: (3, 3, Cin, Cf) (HWIO);
    fc_w: (Cf, n_classes); returns (N, n_classes) float32."""
    n, h, w, cin = x_nhwc.shape
    cf = conv_w.shape[-1]

    kp = _round_up(9 * cin, 128)        # lane-dense folded contraction dim
    cfp = _round_up(cf, 128)            # lane-dense conv channels
    ncp = _round_up(n_classes, 128)     # lane-dense output classes

    budget, vmem_limit = _vmem_budget_bytes()
    th = row_tile if row_tile is not None else _pick_row_tile(
        h, w, kp, cfp, ncp, budget)
    assert h % th == 0, "row_tile must divide H"
    n_t = h // th

    # Host-side im2col: SAME-pad, gather the 9 shifted views, fold (kh,kw,cin)
    # into one lane-dense contraction axis padded to Kp, flatten spatial.
    xpad = jnp.pad(x_nhwc, ((0, 0), (1, 1), (1, 1), (0, 0)))   # (N,H+2,W+2,Cin)
    views = [xpad[:, kh:kh + h, kw:kw + w, :]
             for kh in range(3) for kw in range(3)]
    patches = jnp.concatenate(views, axis=-1)                  # (N,H,W,9*Cin)
    patches = jnp.pad(patches, ((0, 0), (0, 0), (0, 0), (0, kp - 9 * cin)))
    patches = patches.reshape(n, h * w, kp).astype(COMPUTE_DTYPE)

    # Weights: (3,3,Cin,Cf) HWIO -> (9*Cin, Cf), kh/kw/cin order matching the
    # im2col concat order above; zero-pad to (Kp, Cfp), bf16 for the MXU.
    wmat = jnp.pad(conv_w.reshape(9 * cin, cf),
                   ((0, kp - 9 * cin), (0, cfp - cf))).astype(COMPUTE_DTYPE)
    cb = jnp.pad(conv_b, (0, cfp - cf)).reshape(1, cfp).astype(jnp.float32)
    fcw = jnp.pad(fc_w, ((0, cfp - cf), (0, ncp - n_classes))).astype(jnp.float32)
    fcb = jnp.pad(fc_b, (0, ncp - n_classes)).reshape(1, ncp).astype(jnp.float32)

    kernel = functools.partial(_fused_kernel, hw_total=h * w)

    out3 = pl.pallas_call(
        kernel,
        out_shape=jax.ShapeDtypeStruct((n, 1, ncp), jnp.float32),
        grid_spec=pltpu.PrefetchScalarGridSpec(
            num_scalar_prefetch=0,
            grid=(n, n_t),
            in_specs=[
                # rows [t*TH*W, (t+1)*TH*W) of batch b's flattened patch matrix
                pl.BlockSpec((1, th * w, kp), lambda b, t: (b, t, 0)),
                pl.BlockSpec((kp, cfp), lambda b, t: (0, 0)),
                pl.BlockSpec((1, cfp), lambda b, t: (0, 0)),
                pl.BlockSpec((cfp, ncp), lambda b, t: (0, 0)),
                pl.BlockSpec((1, ncp), lambda b, t: (0, 0)),
            ],
            out_specs=pl.BlockSpec((1, 1, ncp), lambda b, t: (b, 0, 0)),
            scratch_shapes=[pltpu.VMEM((1, cfp), jnp.float32)],
        ),
        compiler_params=pltpu.CompilerParams(
            dimension_semantics=("parallel", "arbitrary"),
            vmem_limit_bytes=vmem_limit,
        ),
    )(patches, wmat, cb, fcw, fcb)

    return out3[:, 0, :n_classes]


def reference_forward(x_nhwc, conv_w, conv_b, fc_w, fc_b):
    """Plain-JAX f32 reference for correctness checking."""
    conv = lax.conv_general_dilated(
        x_nhwc, conv_w, window_strides=(1, 1), padding="SAME",
        dimension_numbers=("NHWC", "HWIO", "NHWC"))
    o = jnp.maximum(conv + conv_b, 0.0)
    o = jnp.maximum(o, GEM_EPS)                      # clamp(min=eps)
    pooled = jnp.mean(o ** GEM_P, axis=(1, 2)) ** (1.0 / GEM_P)
    return pooled @ fc_w + fc_b


if __name__ == "__main__":
    # Small shapes consistent with the module's forward.
    N, Cin, H, W = 2, 4, 16, 16       # input image, NCHW in PyTorch terms
    Cf = 32                           # in_features (conv output channels)
    n_classes = 10

    key = jax.random.PRNGKey(0)
    k_x, k_cw, k_cb, k_fw, k_fb = jax.random.split(key, 5)

    x_nchw = jax.random.normal(k_x, (N, Cin, H, W), dtype=jnp.float32)
    x_nhwc = jnp.transpose(x_nchw, (0, 2, 3, 1))      # NCHW -> NHWC

    # Deterministic parameter init (synthetic weights, not a checkpoint).
    conv_w = 0.1 * jax.random.normal(k_cw, (3, 3, Cin, Cf), dtype=jnp.float32)
    conv_b = 0.1 * jax.random.normal(k_cb, (Cf,), dtype=jnp.float32)
    fc_w = 0.1 * jax.random.normal(k_fw, (Cf, n_classes), dtype=jnp.float32)
    fc_b = 0.1 * jax.random.normal(k_fb, (n_classes,), dtype=jnp.float32)

    ref = reference_forward(x_nhwc, conv_w, conv_b, fc_w, fc_b)

    # Auto-selected (largest-fitting) row tile: single spatial step here.
    out_auto = gemnet_forward(x_nhwc, conv_w, conv_b, fc_w, fc_b,
                              n_classes=n_classes)
    out_auto = jax.block_until_ready(out_auto)
    assert out_auto.shape == (N, n_classes)
    assert jnp.allclose(out_auto, ref, rtol=2e-2, atol=2e-2), (
        f"auto tile: max abs diff = {jnp.max(jnp.abs(out_auto - ref))}")

    # row_tile=8 -> 2 spatial grid steps, exercising the accumulation path.
    out_acc = gemnet_forward(x_nhwc, conv_w, conv_b, fc_w, fc_b,
                             n_classes=n_classes, row_tile=8)
    out_acc = jax.block_until_ready(out_acc)
    assert jnp.allclose(out_acc, ref, rtol=2e-2, atol=2e-2), (
        f"row_tile=8: max abs diff = {jnp.max(jnp.abs(out_acc - ref))}")

    print("KERNEL_OK")
</pallas_src>

<mosaic_0001>
module attributes {stable_mosaic.version = 11 : i64} {
  func.func @_fused_kernel(%arg0: i32, %arg1: i32, %arg2: memref<1x256x128xbf16, #tpu.memory_space<vmem>>, %arg3: memref<128x128xbf16, #tpu.memory_space<vmem>>, %arg4: memref<1x128xf32, #tpu.memory_space<vmem>>, %arg5: memref<128x128xf32, #tpu.memory_space<vmem>>, %arg6: memref<1x128xf32, #tpu.memory_space<vmem>>, %arg7: memref<1x1x128xf32, #tpu.memory_space<vmem>>, %arg8: memref<1x128xf32, #tpu.memory_space<vmem>>) attributes {dimension_semantics = [#tpu.dimension_semantics<parallel>, #tpu.dimension_semantics<arbitrary>], iteration_bounds = array<i64: 2, 1>, scalar_prefetch = 0 : i64, scratch_operands = 1 : i64, tpu.core_type = #tpu.core_type<tc>, window_params = [{transform_indices = @transform_0, window_bounds = array<i64: 1, 256, 128>}, {pipeline_mode = #tpu.pipeline_mode<synchronous>, transform_indices = @transform_1, window_bounds = array<i64: 128, 128>}, {pipeline_mode = #tpu.pipeline_mode<synchronous>, transform_indices = @transform_2, window_bounds = array<i64: 1, 128>}, {pipeline_mode = #tpu.pipeline_mode<synchronous>, transform_indices = @transform_3, window_bounds = array<i64: 128, 128>}, {pipeline_mode = #tpu.pipeline_mode<synchronous>, transform_indices = @transform_4, window_bounds = array<i64: 1, 128>}, {transform_indices = @transform_5, window_bounds = array<i64: 1, 1, 128>}]} {
    %c0_i32 = arith.constant 0 : i32
    %0 = arith.cmpi eq, %arg1, %c0_i32 : i32
    %1 = arith.extui %0 : i1 to i32
    %c0_i32_0 = arith.constant 0 : i32
    %2 = arith.cmpi ne, %1, %c0_i32_0 : i32
    scf.if %2 {
      %cst_15 = arith.constant 0.000000e+00 : f32
      %22 = vector.broadcast %cst_15 : f32 to vector<1x128xf32>
      %c0_16 = arith.constant 0 : index
      %c0_17 = arith.constant 0 : index
      %23 = vector.load %arg8[%c0_16, %c0_17] : memref<1x128xf32, #tpu.memory_space<vmem>>, vector<1x128xf32>
      tpu.vector_store %arg8[%c0_16, %c0_17], %22 {strides = array<i32>} : memref<1x128xf32, #tpu.memory_space<vmem>>, vector<1x128xf32>,
    } else {
    }
    %c0 = arith.constant 0 : index
    %c0_1 = arith.constant 0 : index
    %c0_2 = arith.constant 0 : index
    %3 = vector.load %arg2[%c0, %c0_1, %c0_2] : memref<1x256x128xbf16, #tpu.memory_space<vmem>>, vector<1x256x128xbf16>
    %4 = vector.shape_cast %3 : vector<1x256x128xbf16> to vector<256x128xbf16>
    %c0_3 = arith.constant 0 : index
    %c0_4 = arith.constant 0 : index
    %5 = vector.load %arg3[%c0_3, %c0_4] : memref<128x128xbf16, #tpu.memory_space<vmem>>, vector<128x128xbf16>
    %cst = arith.constant dense<0.000000e+00> : vector<256x128xf32>
    %6 = tpu.matmul %4, %5, %cst {dimension_numbers = #tpu.dot_dimension_numbers<[1], [0], [0], [1], [0, 0, 1, 1], [], []>} : vector<256x128xbf16>, vector<128x128xbf16>, vector<256x128xf32> -> vector<256x128xf32>
    %c0_5 = arith.constant 0 : index
    %c0_6 = arith.constant 0 : index
    %7 = vector.load %arg4[%c0_5, %c0_6] : memref<1x128xf32, #tpu.memory_space<vmem>>, vector<1x128xf32>
    %8 = vector.broadcast %7 : vector<1x128xf32> to vector<256x128xf32>
    %9 = arith.addf %6, %8 : vector<256x128xf32>
    %cst_7 = arith.constant 9.99999997E-7 : f32
    %10 = vector.broadcast %cst_7 : f32 to vector<256x128xf32>
    %11 = arith.maximumf %9, %10 : vector<256x128xf32>
    %c0_8 = arith.constant 0 : index
    %c0_9 = arith.constant 0 : index
    %12 = vector.load %arg8[%c0_8, %c0_9] : memref<1x128xf32, #tpu.memory_space<vmem>>, vector<1x128xf32>
    %13 = arith.mulf %11, %11 : vector<256x128xf32>
    %14 = arith.mulf %13, %11 : vector<256x128xf32>
    %cst_10 = arith.constant dense<0.000000e+00> : vector<128xf32>
    %15 = vector.multi_reduction <add>, %14, %cst_10 [0] : vector<256x128xf32> to vector<128xf32>
    %16 = vector.shape_cast %15 : vector<128xf32> to vector<1x128xf32>
    %17 = arith.addf %12, %16 : vector<1x128xf32>
    %c0_11 = arith.constant 0 : index
    %c0_12 = arith.constant 0 : index
    %18 = vector.load %arg8[%c0_11, %c0_12] : memref<1x128xf32, #tpu.memory_space<vmem>>, vector<1x128xf32>
    tpu.vector_store %arg8[%c0_11, %c0_12], %17 {strides = array<i32>} : memref<1x128xf32, #tpu.memory_space<vmem>>, vector<1x128xf32>,
    %c0_i32_13 = arith.constant 0 : i32
    %19 = arith.cmpi eq, %arg1, %c0_i32_13 : i32
    %20 = arith.extui %19 : i1 to i32
    %c0_i32_14 = arith.constant 0 : i32
    %21 = arith.cmpi ne, %20, %c0_i32_14 : i32
    scf.if %21 {
      %c0_15 = arith.constant 0 : index
      %c0_16 = arith.constant 0 : index
      %22 = vector.load %arg8[%c0_15, %c0_16] : memref<1x128xf32, #tpu.memory_space<vmem>>, vector<1x128xf32>
      %cst_17 = arith.constant 3.906250e-03 : f32
      %23 = vector.broadcast %cst_17 : f32 to vector<1x128xf32>
      %24 = arith.mulf %22, %23 : vector<1x128xf32>
      %cst_18 = arith.constant 1.000000e-30 : f32
      %25 = vector.broadcast %cst_18 : f32 to vector<1x128xf32>
      %26 = arith.maximumf %24, %25 : vector<1x128xf32>
      %27 = math.log %26 : vector<1x128xf32>
      %cst_19 = arith.constant 0.333333343 : f32
      %28 = vector.broadcast %cst_19 : f32 to vector<1x128xf32>
      %29 = arith.mulf %27, %28 : vector<1x128xf32>
      %30 = math.exp %29 : vector<1x128xf32>
      %c0_20 = arith.constant 0 : index
      %c0_21 = arith.constant 0 : index
      %31 = vector.load %arg5[%c0_20, %c0_21] : memref<128x128xf32, #tpu.memory_space<vmem>>, vector<128x128xf32>
      %cst_22 = arith.constant dense<0.000000e+00> : vector<1x128xf32>
      %32 = tpu.matmul %30, %31, %cst_22 {dimension_numbers = #tpu.dot_dimension_numbers<[1], [0], [0], [1], [0, 0, 1, 1], [], []>} : vector<1x128xf32>, vector<128x128xf32>, vector<1x128xf32> -> vector<1x128xf32>
      %c0_23 = arith.constant 0 : index
      %c0_24 = arith.constant 0 : index
      %33 = vector.load %arg6[%c0_23, %c0_24] : memref<1x128xf32, #tpu.memory_space<vmem>>, vector<1x128xf32>
      %34 = arith.addf %32, %33 : vector<1x128xf32>
      %35 = vector.shape_cast %34 : vector<1x128xf32> to vector<1x1x128xf32>
      %c0_25 = arith.constant 0 : index
      %c0_26 = arith.constant 0 : index
      %c0_27 = arith.constant 0 : index
      %36 = vector.load %arg7[%c0_25, %c0_26, %c0_27] : memref<1x1x128xf32, #tpu.memory_space<vmem>>, vector<1x1x128xf32>
      tpu.vector_store %arg7[%c0_25, %c0_26, %c0_27], %35 {strides = array<i32>} : memref<1x1x128xf32, #tpu.memory_space<vmem>>, vector<1x1x128xf32>,
    } else {
    }
    return
  }
  func.func @transform_0(%arg0: i32, %arg1: i32) -> (i32, i32, i32) {
    %c0_i32 = arith.constant 0 : i32
    %c0_i32_0 = arith.constant 0 : i32
    return %arg0, %arg1, %c0_i32 : i32, i32, i32
  }
  func.func @transform_1(%arg0: i32, %arg1: i32) -> (i32, i32) {
    %c0_i32 = arith.constant 0 : i32
    %c0_i32_0 = arith.constant 0 : i32
    %c0_i32_1 = arith.constant 0 : i32
    return %c0_i32, %c0_i32_0 : i32, i32
  }
  func.func @transform_2(%arg0: i32, %arg1: i32) -> (i32, i32) {
    %c0_i32 = arith.constant 0 : i32
    %c0_i32_0 = arith.constant 0 : i32
    %c0_i32_1 = arith.constant 0 : i32
    return %c0_i32, %c0_i32_0 : i32, i32
  }
  func.func @transform_3(%arg0: i32, %arg1: i32) -> (i32, i32) {
    %c0_i32 = arith.constant 0 : i32
    %c0_i32_0 = arith.constant 0 : i32
    %c0_i32_1 = arith.constant 0 : i32
    return %c0_i32, %c0_i32_0 : i32, i32
  }
  func.func @transform_4(%arg0: i32, %arg1: i32) -> (i32, i32) {
    %c0_i32 = arith.constant 0 : i32
    %c0_i32_0 = arith.constant 0 : i32
    %c0_i32_1 = arith.constant 0 : i32
    return %c0_i32, %c0_i32_0 : i32, i32
  }
  func.func @transform_5(%arg0: i32, %arg1: i32) -> (i32, i32, i32) {
    %c0_i32 = arith.constant 0 : i32
    %c0_i32_0 = arith.constant 0 : i32
    %c0_i32_1 = arith.constant 0 : i32
    return %arg0, %c0_i32, %c0_i32_0 : i32, i32, i32
  }
}

</mosaic_0001>

<llo_original>
// kernel: gemnet_forward.1
$region0: #{gemnet_forward.1}
  #allocation0 [shape = 'u32[]', space=smem, size = 0x4, offset = 0x4, fixed_abs, tag = 'smem constant byte address 0x4 - core index']
  #allocation1 [shape = 'u32[72,128]{1,0:T(1,128)}', space=vmem, size = 0x9000, scoped, tag = 'internal scratch']
  #allocation2 [shape = 'f32[1,128]{1,0:T(1,128)}', space=vmem, size = 0x200, scoped, tag = 'scratch operand']
  %s0 = inlined_call_operand.vmem [shape: bf16[2,256,128], index: 0, kind: input, shape index: {}]
  %s1 = inlined_call_operand.vmem [shape: bf16[128,128], index: 1, kind: input, shape index: {}]
  %s2 = inlined_call_operand.vmem [shape: f32[1,128], index: 2, kind: input, shape index: {}]
  %s3 = inlined_call_operand.vmem [shape: f32[128,128], index: 3, kind: input, shape index: {}]
  %s4 = inlined_call_operand.vmem [shape: f32[1,128], index: 4, kind: input, shape index: {}]
  %s5 = inlined_call_operand.hbm [shape: f32[2,1,128], index: 5, kind: output, shape index: {}]
  %s6 = sld [smem:[#allocation0]]
  $region61: #{gemnet_forward.1} parent=0
    _
  %s8 = ssub.s32 1, %s6
  %s9 = scalar_select 0, %s8, %s6
  $region1: #{gemnet_forward.1} parent=0
    #allocation3 [shape = 'u8[1024]{0}', space=vmem, size = 0x400, scoped, tag = 'output window, operand 0']
    #allocation4 [shape = 's32[2]{0}', space=sflag, size = 0x8, scoped, tag = 'scoped memory for gemnet_forward.1']
    %10 = vsyncpa [#allocation4], 0
    %s11 = scalar_lea.sflag [#allocation4], 1
    %12 = vsyncpa %s11, 0
    loop: start=0, step=1, limit=4
    $region2: #{gemnet_forward.1} parent=1 // loop_pre_header
      _
    $region3: #{gemnet_forward.1} parent=1 // loop_header
      %s14 = sphi 0, %s18
      %p15 = scmp.ge.s32.totalorder %s14, 4
      %s21 = sphi 0, %s33
      %s22 = sphi 0, %s29
      %s23 = sphi 0, %s21
      %s24 = sphi 0, %s22
      %s25 = sphi 0, %s23
      %s26 = sphi 0, %s24
      %s38 = sphi 0, %s40
      %s41 = sphi 0, %s38
      %s42 = sphi 0, %s41
      %s58 = sphi 0, %s42
      %s62 = sphi 0, %s62
      %s64 = sphi 0, %s62
      %s65 = sphi 0, %s64
      %s79 = sphi 0, %s65
      %s83 = sphi 0, %s83
      %s85 = sphi 0, %s83
      %s86 = sphi 0, %s85
      %s100 = sphi 0, %s86
      %s104 = sphi 0, %s104
      %s106 = sphi 0, %s104
      %s107 = sphi 0, %s106
      %s121 = sphi 0, %s107
      %s125 = sphi 0, %s125
      %s127 = sphi 0, %s125
      %s128 = sphi 0, %s127
      %s142 = sphi 0, %s128
      %s148 = sphi 0, %s150
      %s151 = sphi 0, %s148
      %s152 = sphi 0, %s151
      %s168 = sphi 0, %s152
    $region4: #{gemnet_forward.1} parent=1 // loop_header_branch
      %17 = sbr.rel (%p15) target = $region8
    $region5: #{gemnet_forward.1} parent=1 // loop_body
      %s19 = ssub.s32 %s14, 1
      %s20 = ssub.s32 %s14, 2
      %s27 = sadd.s32 1, %s22
      %p28 = scmp.ge.s32.totalorder %s27, 1
      %s29 = scalar_select %p28, 0, %s27
      %s30 = sadd.s32 1, %s21
      %s31 = scalar_select %p28, %s30, %s21
      %p32 = scmp.ge.s32.totalorder %s31, 2
      %s33 = scalar_select %p32, 0, %s31
      %s34 = ssub.s32 %s21, %s33
      %s35 = ssub.s32 %s22, %s29
      %s36 = sor.u32 %s34, %s35
      %p37 = scmp.eq.s32.totalorder %s36, 0
      %s39 = sadd.s32 %s38, 1
      %s40 = scalar_select %p37, %s38, %s39
      %p43 = pneg %p37
      %p44 = scmp.eq.s32.totalorder %s14, 1
      %p45 = por %p43, %p44
      %p46 = scmp.ne.s32.totalorder %s38, %s41
      %p47 = scmp.eq.s32.totalorder %s14, 0
      %p48 = por %p46, %p47
      %p49 = scmp.ne.s32.totalorder %s38, %s41
      %p50 = scmp.eq.s32.totalorder %s19, 1
      %p51 = por %p49, %p50
      %p52 = scmp.ne.s32.totalorder %s41, %s42
      %p53 = scmp.eq.s32.totalorder %s19, 0
      %p54 = por %p52, %p53
      %p55 = scmp.ne.s32.totalorder %s41, %s42
      %p56 = scmp.eq.s32.totalorder %s20, 1
      %p57 = por %p55, %p56
      %p59 = scmp.ne.s32.totalorder %s42, %s58
      %p60 = scmp.eq.s32.totalorder %s20, 0
      %p61 = por %p59, %p60
      %s63 = sadd.s32 %s62, 1
      %p66 = scmp.eq.s32.totalorder %s14, 1
      %p67 = scmp.ne.s32.totalorder %s62, %s64
      %p68 = scmp.eq.s32.totalorder %s14, 0
      %p69 = por %p67, %p68
      %p70 = scmp.ne.s32.totalorder %s62, %s64
      %p71 = scmp.eq.s32.totalorder %s19, 1
      %p72 = por %p70, %p71
      %p73 = scmp.ne.s32.totalorder %s64, %s65
      %p74 = scmp.eq.s32.totalorder %s19, 0
      %p75 = por %p73, %p74
      %p76 = scmp.ne.s32.totalorder %s64, %s65
      %p77 = scmp.eq.s32.totalorder %s20, 1
      %p78 = por %p76, %p77
      %p80 = scmp.ne.s32.totalorder %s65, %s79
      %p81 = scmp.eq.s32.totalorder %s20, 0
      %p82 = por %p80, %p81
      %s84 = sadd.s32 %s83, 1
      %p87 = scmp.eq.s32.totalorder %s14, 1
      %p88 = scmp.ne.s32.totalorder %s83, %s85
      %p89 = scmp.eq.s32.totalorder %s14, 0
      %p90 = por %p88, %p89
      %p91 = scmp.ne.s32.totalorder %s83, %s85
      %p92 = scmp.eq.s32.totalorder %s19, 1
      %p93 = por %p91, %p92
      %p94 = scmp.ne.s32.totalorder %s85, %s86
      %p95 = scmp.eq.s32.totalorder %s19, 0
      %p96 = por %p94, %p95
      %p97 = scmp.ne.s32.totalorder %s85, %s86
      %p98 = scmp.eq.s32.totalorder %s20, 1
      %p99 = por %p97, %p98
      %p101 = scmp.ne.s32.totalorder %s86, %s100
      %p102 = scmp.eq.s32.totalorder %s20, 0
      %p103 = por %p101, %p102
      %s105 = sadd.s32 %s104, 1
      %p108 = scmp.eq.s32.totalorder %s14, 1
      %p109 = scmp.ne.s32.totalorder %s104, %s106
      %p110 = scmp.eq.s32.totalorder %s14, 0
      %p111 = por %p109, %p110
      %p112 = scmp.ne.s32.totalorder %s104, %s106
      %p113 = scmp.eq.s32.totalorder %s19, 1
      %p114 = por %p112, %p113
      %p115 = scmp.ne.s32.totalorder %s106, %s107
      %p116 = scmp.eq.s32.totalorder %s19, 0
      %p117 = por %p115, %p116
      %p118 = scmp.ne.s32.totalorder %s106, %s107
      %p119 = scmp.eq.s32.totalorder %s20, 1
      %p120 = por %p118, %p119
      %p122 = scmp.ne.s32.totalorder %s107, %s121
      %p123 = scmp.eq.s32.totalorder %s20, 0
      %p124 = por %p122, %p123
      %s126 = sadd.s32 %s125, 1
      %p129 = scmp.eq.s32.totalorder %s14, 1
      %p130 = scmp.ne.s32.totalorder %s125, %s127
      %p131 = scmp.eq.s32.totalorder %s14, 0
      %p132 = por %p130, %p131
      %p133 = scmp.ne.s32.totalorder %s125, %s127
      %p134 = scmp.eq.s32.totalorder %s19, 1
      %p135 = por %p133, %p134
      %p136 = scmp.ne.s32.totalorder %s127, %s128
      %p137 = scmp.eq.s32.totalorder %s19, 0
      %p138 = por %p136, %p137
      %p139 = scmp.ne.s32.totalorder %s127, %s128
      %p140 = scmp.eq.s32.totalorder %s20, 1
      %p141 = por %p139, %p140
      %p143 = scmp.ne.s32.totalorder %s128, %s142
      %p144 = scmp.eq.s32.totalorder %s20, 0
      %p145 = por %p143, %p144
      %s146 = ssub.s32 %s21, %s33
      %p147 = scmp.eq.s32.totalorder %s146, 0
      %s149 = sadd.s32 %s148, 1
      %s150 = scalar_select %p147, %s148, %s149
      %p153 = pneg %p147
      %p154 = scmp.eq.s32.totalorder %s14, 1
      %p155 = por %p153, %p154
      %p156 = scmp.ne.s32.totalorder %s148, %s151
      %p157 = scmp.eq.s32.totalorder %s14, 0
      %p158 = por %p156, %p157
      %p159 = scmp.ne.s32.totalorder %s148, %s151
      %p160 = scmp.eq.s32.totalorder %s19, 1
      %p161 = por %p159, %p160
      %p162 = scmp.ne.s32.totalorder %s151, %s152
      %p163 = scmp.eq.s32.totalorder %s19, 0
      %p164 = por %p162, %p163
      %p165 = scmp.ne.s32.totalorder %s151, %s152
      %p166 = scmp.eq.s32.totalorder %s20, 1
      %p167 = por %p165, %p166
      %p169 = scmp.ne.s32.totalorder %s152, %s168
      %p170 = scmp.eq.s32.totalorder %s20, 0
      %p171 = por %p169, %p170
      %p172 = scmp.le.s32.totalorder 1, %s14
      %p173 = scmp.lt.s32.totalorder %s14, 3
      %p174 = pnand %p172, %p173
      %p175 = pneg %p174
      // Predicated region
      $region9: #{gemnet_forward.1} parent=5 // pred_check
        _
      $region10: #{gemnet_forward.1} parent=5 // pred_check_branch
        %177 = sbr.rel (%p174) target = $region12
      $region11: #{gemnet_forward.1} parent=5 // pred_region
        %s178 = ssub.s32 %s14, 1
        // Predicated region
        $region13: #{gemnet_forward.1} parent=11 // pred_check
          %p179 = pneg %p75
        $region14: #{gemnet_forward.1} parent=11 // pred_check_branch
          %181 = sbr.rel (%p179) target = $region16
        $region15: #{gemnet_forward.1} parent=11 // pred_region
          _
        $region16: #{gemnet_forward.1} parent=11 // pred_fallthru
          _
        // Predicated region
        $region17: #{gemnet_forward.1} parent=11 // pred_check
          %p182 = pneg %p96
        $region18: #{gemnet_forward.1} parent=11 // pred_check_branch
          %184 = sbr.rel (%p182) target = $region20
        $region19: #{gemnet_forward.1} parent=11 // pred_region
          _
        $region20: #{gemnet_forward.1} parent=11 // pred_fallthru
          _
        // Predicated region
        $region21: #{gemnet_forward.1} parent=11 // pred_check
          %p185 = pneg %p117
        $region22: #{gemnet_forward.1} parent=11 // pred_check_branch
          %187 = sbr.rel (%p185) target = $region24
        $region23: #{gemnet_forward.1} parent=11 // pred_region
          _
        $region24: #{gemnet_forward.1} parent=11 // pred_fallthru
          _
        // Predicated region
        $region25: #{gemnet_forward.1} parent=11 // pred_check
          %p188 = pneg %p138
        $region26: #{gemnet_forward.1} parent=11 // pred_check_branch
          %190 = sbr.rel (%p188) target = $region28
        $region27: #{gemnet_forward.1} parent=11 // pred_region
          _
        $region28: #{gemnet_forward.1} parent=11 // pred_fallthru
          _
      $region12: #{gemnet_forward.1} parent=5 // pred_fallthru
        _
      %p191 = scmp.lt.s32.totalorder %s14, 2
      // Predicated region
      $region29: #{gemnet_forward.1} parent=5 // pred_check
        %p192 = pneg %p191
      $region30: #{gemnet_forward.1} parent=5 // pred_check_branch
        %194 = sbr.rel (%p192) target = $region32
      $region31: #{gemnet_forward.1} parent=5 // pred_region
        // Predicated region
        $region33: #{gemnet_forward.1} parent=31 // pred_check
          %p195 = pneg %p48
        $region34: #{gemnet_forward.1} parent=31 // pred_check_branch
          %197 = sbr.rel (%p195) target = $region36
        $region35: #{gemnet_forward.1} parent=31 // pred_region
          %s198 = smul.u32 32, %s22
          %p199 = scmp.lt.s32.totalorder %s21, 1
          %s200 = scalar_select %p199, %s21, 1
          %p201 = scmp.lt.s32.totalorder %s198, 31
          %s202 = scalar_select %p201, %s198, 31
          %s203 = smul.addr %s200, 32
          %s204 = sadd.s32 %s202, %s203
          %s205 = smul.addr %s204, 4
          %s206 = scalar_lea.vmem %s0, %s205
          %s207 = smul.u32 32, %s22
        $region36: #{gemnet_forward.1} parent=31 // pred_fallthru
          _
      $region32: #{gemnet_forward.1} parent=5 // pred_fallthru
        _
      %p208 = scmp.le.s32.totalorder 1, %s14
      %p209 = scmp.lt.s32.totalorder %s14, 3
      %p210 = pnand %p208, %p209
      %p211 = pneg %p210
      // Predicated region
      $region37: #{gemnet_forward.1} parent=5 // pred_check
        _
      $region38: #{gemnet_forward.1} parent=5 // pred_check_branch
        %213 = sbr.rel (%p210) target = $region40
      $region39: #{gemnet_forward.1} parent=5 // pred_region
        %s214 = ssub.s32 %s14, 1
        %s215 = smul.u32 32, %s24
        %p216 = scmp.lt.s32.totalorder %s23, 1
        %s217 = scalar_select %p216, %s23, 1
        %p218 = scmp.lt.s32.totalorder %s215, 31
        %s219 = scalar_select %p218, %s215, 31
        %s220 = smul.addr %s217, 32
        %s221 = sadd.s32 %s219, %s220
        %s222 = smul.addr %s221, 4
        %s223 = scalar_lea.vmem %s0, %s222
        %p224 = pneg %p54
        %p225 = pneg %p51
        %p226 = pneg %p75
        %p227 = pneg %p72
        %p228 = pneg %p96
        %p229 = pneg %p93
        %p230 = pneg %p117
        %p231 = pneg %p114
        %p232 = pneg %p138
        %p233 = pneg %p135
        %p234 = pneg %p164
        %p235 = pneg %p161
        %s236 = sand.u32 %s151, 1
        %s237 = scalar_lea.sflag [#allocation4], %s236
        %s238 = sand.u32 %s151, 1
        %s239 = scalar_lea.vmem [#allocation3], %s238
        %s240 = smul.u32 32, %s24
        %p241 = scmp.lt.s32.totalorder %s23, 1
        %s242 = scalar_select %p241, %s23, 1
        %p243 = scmp.lt.s32.totalorder %s240, 31
        %s244 = scalar_select %p243, %s240, 31
        %s245 = smul.addr %s242, 32
        %s246 = sadd.s32 %s244, %s245
        %s247 = smul.addr %s246, 4
        %s248 = scalar_lea.vmem %s0, %s247
        %s249 = smul.u32 32, %s24
        %p250 = scmp.eq.s32.totalorder %s24, 0
        // Predicated region
        $region41: #{gemnet_forward.1} parent=39 // pred_check
          %p251 = pneg %p250
        $region42: #{gemnet_forward.1} parent=39 // pred_check_branch
          %253 = sbr.rel (%p251) target = $region44
        $region43: #{gemnet_forward.1} parent=39 // pred_region
          %254 = vst [vmem:[#allocation2] sm:$0x1] 0.0
        $region44: #{gemnet_forward.1} parent=39 // pred_fallthru
          _
        %v255 = vld [vmem:[%s248] sm:$0xf]
        %v256 = vld [vmem:[%s248 + $0x4] sm:$0xf]
        %v257 = vld [vmem:[%s248 + $0x8] sm:$0xf]
        %v258 = vld [vmem:[%s248 + $0xc] sm:$0xf]
        %v259 = vld [vmem:[%s248 + $0x10] sm:$0xf]
        %v260 = vld [vmem:[%s248 + $0x14] sm:$0xf]
        %v261 = vld [vmem:[%s248 + $0x18] sm:$0xf]
        %v262 = vld [vmem:[%s248 + $0x1c] sm:$0xf]
        %v263 = vld [vmem:[%s248 + $0x20] sm:$0xf]
        %v264 = vld [vmem:[%s248 + $0x24] sm:$0xf]
        %v265 = vld [vmem:[%s248 + $0x28] sm:$0xf]
        %v266 = vld [vmem:[%s248 + $0x2c] sm:$0xf]
        %v267 = vld [vmem:[%s248 + $0x30] sm:$0xf]
        %v268 = vld [vmem:[%s248 + $0x34] sm:$0xf]
        %v269 = vld [vmem:[%s248 + $0x38] sm:$0xf]
        %v270 = vld [vmem:[%s248 + $0x3c] sm:$0xf]
        %v271 = vld [vmem:[%s248 + $0x40] sm:$0xf]
        %v272 = vld [vmem:[%s248 + $0x44] sm:$0xf]
        %v273 = vld [vmem:[%s248 + $0x48] sm:$0xf]
        %v274 = vld [vmem:[%s248 + $0x4c] sm:$0xf]
        %v275 = vld [vmem:[%s248 + $0x50] sm:$0xf]
        %v276 = vld [vmem:[%s248 + $0x54] sm:$0xf]
        %v277 = vld [vmem:[%s248 + $0x58] sm:$0xf]
        %v278 = vld [vmem:[%s248 + $0x5c] sm:$0xf]
        %v279 = vld [vmem:[%s248 + $0x60] sm:$0xf]
        %v280 = vld [vmem:[%s248 + $0x64] sm:$0xf]
        %v281 = vld [vmem:[%s248 + $0x68] sm:$0xf]
        %v282 = vld [vmem:[%s248 + $0x6c] sm:$0xf]
        %v283 = vld [vmem:[%s248 + $0x70] sm:$0xf]
        %v284 = vld [vmem:[%s248 + $0x74] sm:$0xf]
        %v285 = vld [vmem:[%s248 + $0x78] sm:$0xf]
        %v286 = vld [vmem:[%s248 + $0x7c] sm:$0xf]
        %v287 = vld [vmem:[%s1] sm:$0xf]
        %v288 = vld [vmem:[%s1 + $0x4] sm:$0xf]
        %v289 = vld [vmem:[%s1 + $0x8] sm:$0xf]
        %v290 = vld [vmem:[%s1 + $0xc] sm:$0xf]
        %v291 = vld [vmem:[%s1 + $0x10] sm:$0xf]
        %v292 = vld [vmem:[%s1 + $0x14] sm:$0xf]
        %v293 = vld [vmem:[%s1 + $0x18] sm:$0xf]
        %v294 = vld [vmem:[%s1 + $0x1c] sm:$0xf]
        %v295 = vld [vmem:[%s1 + $0x20] sm:$0xf]
        %v296 = vld [vmem:[%s1 + $0x24] sm:$0xf]
        %v297 = vld [vmem:[%s1 + $0x28] sm:$0xf]
        %v298 = vld [vmem:[%s1 + $0x2c] sm:$0xf]
        %v299 = vld [vmem:[%s1 + $0x30] sm:$0xf]
        %v300 = vld [vmem:[%s1 + $0x34] sm:$0xf]
        %v301 = vld [vmem:[%s1 + $0x38] sm:$0xf]
        %v302 = vld [vmem:[%s1 + $0x3c] sm:$0xf]
        %v303 = vld [vmem:[%s2] sm:$0x1]
        %v305 = vperm.slane %v303, 0
        %v339 = vunpack.c.l.b16 %v255
        %v340 = vunpack.c.l.b16 %v256
        %v341 = vunpack.c.l.b16 %v257
        %v342 = vunpack.c.l.b16 %v258
        %v343 = vunpack.c.l.b16 %v259
        %v344 = vunpack.c.l.b16 %v260
        %v345 = vunpack.c.l.b16 %v261
        %v346 = vunpack.c.l.b16 %v262
        %v347 = vunpack.c.l.b16 %v263
        %v348 = vunpack.c.l.b16 %v264
        %v349 = vunpack.c.l.b16 %v265
        %v350 = vunpack.c.l.b16 %v266
        %v351 = vunpack.c.l.b16 %v267
        %v352 = vunpack.c.l.b16 %v268
        %v353 = vunpack.c.l.b16 %v269
        %v354 = vunpack.c.l.b16 %v270
        %v355 = vunpack.c.l.b16 %v271
        %v356 = vunpack.c.l.b16 %v272
        %v357 = vunpack.c.l.b16 %v273
        %v358 = vunpack.c.l.b16 %v274
        %v359 = vunpack.c.l.b16 %v275
        %v360 = vunpack.c.l.b16 %v276
        %v361 = vunpack.c.l.b16 %v277
        %v362 = vunpack.c.l.b16 %v278
        %v363 = vunpack.c.l.b16 %v279
        %v364 = vunpack.c.l.b16 %v280
        %v365 = vunpack.c.l.b16 %v281
        %v366 = vunpack.c.l.b16 %v282
        %v367 = vunpack.c.l.b16 %v283
        %v368 = vunpack.c.l.b16 %v284
        %v369 = vunpack.c.l.b16 %v285
        %v370 = vunpack.c.l.b16 %v286
        %v371 = vpack.c.b16 %v340, %v339
        %v372 = vpack.c.b16 %v342, %v341
        %v373 = vpack.c.b16 %v344, %v343
        %v374 = vpack.c.b16 %v346, %v345
        %v375 = vpack.c.b16 %v348, %v347
        %v376 = vpack.c.b16 %v350, %v349
        %v377 = vpack.c.b16 %v352, %v351
        %v378 = vpack.c.b16 %v354, %v353
        %v379 = vpack.c.b16 %v356, %v355
        %v380 = vpack.c.b16 %v358, %v357
        %v381 = vpack.c.b16 %v360, %v359
        %v382 = vpack.c.b16 %v362, %v361
        %v383 = vpack.c.b16 %v364, %v363
        %v384 = vpack.c.b16 %v366, %v365
        %v385 = vpack.c.b16 %v368, %v367
        %v386 = vpack.c.b16 %v370, %v369
        %v419 = vunpack.c.l.b16 %v287
        %v420 = vunpack.c.l.b16 %v288
        %v421 = vunpack.c.l.b16 %v289
        %v422 = vunpack.c.l.b16 %v290
        %v423 = vunpack.c.l.b16 %v291
        %v424 = vunpack.c.l.b16 %v292
        %v425 = vunpack.c.l.b16 %v293
        %v426 = vunpack.c.l.b16 %v294
        %v427 = vunpack.c.l.b16 %v295
        %v428 = vunpack.c.l.b16 %v296
        %v429 = vunpack.c.l.b16 %v297
        %v430 = vunpack.c.l.b16 %v298
        %v431 = vunpack.c.l.b16 %v299
        %v432 = vunpack.c.l.b16 %v300
        %v433 = vunpack.c.l.b16 %v301
        %v434 = vunpack.c.l.b16 %v302
        %v435 = vpack.c.b16 %v420, %v419
        %v436 = vpack.c.b16 %v422, %v421
        %v437 = vpack.c.b16 %v424, %v423
        %v438 = vpack.c.b16 %v426, %v425
        %v439 = vpack.c.b16 %v428, %v427
        %v440 = vpack.c.b16 %v430, %v429
        %v441 = vpack.c.b16 %v432, %v431
        %v442 = vpack.c.b16 %v434, %v433
        %451 = vmatpush.bf16.msra.mxu0 %v442
        %452 = vmatpush.bf16.msra.mxu0 %v441
        %453 = vmatpush.bf16.msra.mxu0 %v440
        %454 = vmatpush.bf16.msra.mxu0 %v439
        %455 = vmatpush.bf16.msra.mxu0 %v438
        %456 = vmatpush.bf16.msra.mxu0 %v437
        %457 = vmatpush.bf16.msra.mxu0 %v436
        %458 = vmatpush.bf16.msra.mxu0 %v435
        %459 = vmatmul.bf16.gmra.mxu0 %v371
        %v460 = vpop.f32.mrf.mxu0
        %v461 = vadd.f32 %v305, %v460
        %v462 = vpop.f32.mrf.mxu0
        %v463 = vadd.f32 %v305, %v462
        %464 = vmatmul.bf16.gmra.mxu0 %v372
        %v465 = vpop.f32.mrf.mxu0
        %v466 = vadd.f32 %v305, %v465
        %v467 = vpop.f32.mrf.mxu0
        %v468 = vadd.f32 %v305, %v467
        %469 = vmatmul.bf16.gmra.mxu0 %v373
        %v470 = vpop.f32.mrf.mxu0
        %v471 = vadd.f32 %v305, %v470
        %v472 = vpop.f32.mrf.mxu0
        %v473 = vadd.f32 %v305, %v472
        %474 = vmatmul.bf16.gmra.mxu0 %v374
        %v475 = vpop.f32.mrf.mxu0
        %v476 = vadd.f32 %v305, %v475
        %v477 = vpop.f32.mrf.mxu0
        %v478 = vadd.f32 %v305, %v477
        %479 = vmatmul.bf16.gmra.mxu0 %v375
        %v480 = vpop.f32.mrf.mxu0
        %v481 = vadd.f32 %v305, %v480
        %v482 = vpop.f32.mrf.mxu0
        %v483 = vadd.f32 %v305, %v482
        %484 = vmatmul.bf16.gmra.mxu0 %v376
        %v485 = vpop.f32.mrf.mxu0
        %v486 = vadd.f32 %v305, %v485
        %v487 = vpop.f32.mrf.mxu0
        %v488 = vadd.f32 %v305, %v487
        %489 = vmatmul.bf16.gmra.mxu0 %v377
        %v490 = vpop.f32.mrf.mxu0
        %v491 = vadd.f32 %v305, %v490
        %v492 = vpop.f32.mrf.mxu0
        %v493 = vadd.f32 %v305, %v492
        %494 = vmatmul.bf16.gmra.mxu0 %v378
        %v495 = vpop.f32.mrf.mxu0
        %v496 = vadd.f32 %v305, %v495
        %v497 = vpop.f32.mrf.mxu0
        %v498 = vadd.f32 %v305, %v497
        %499 = vmatmul.bf16.gmra.mxu0 %v379
        %v500 = vpop.f32.mrf.mxu0
        %v501 = vadd.f32 %v305, %v500
        %v502 = vpop.f32.mrf.mxu0
        %v503 = vadd.f32 %v305, %v502
        %504 = vmatmul.bf16.gmra.mxu0 %v380
        %v505 = vpop.f32.mrf.mxu0
        %v506 = vadd.f32 %v305, %v505
        %v507 = vpop.f32.mrf.mxu0
        %v508 = vadd.f32 %v305, %v507
        %509 = vmatmul.bf16.gmra.mxu0 %v381
        %v510 = vpop.f32.mrf.mxu0
        %v511 = vadd.f32 %v305, %v510
        %v512 = vpop.f32.mrf.mxu0
        %v513 = vadd.f32 %v305, %v512
        %514 = vmatmul.bf16.gmra.mxu0 %v382
        %v515 = vpop.f32.mrf.mxu0
        %v516 = vadd.f32 %v305, %v515
        %v517 = vpop.f32.mrf.mxu0
        %v518 = vadd.f32 %v305, %v517
        %519 = vmatmul.bf16.gmra.mxu0 %v383
        %v520 = vpop.f32.mrf.mxu0
        %v521 = vadd.f32 %v305, %v520
        %v522 = vpop.f32.mrf.mxu0
        %v523 = vadd.f32 %v305, %v522
        %524 = vmatmul.bf16.gmra.mxu0 %v384
        %v525 = vpop.f32.mrf.mxu0
        %v526 = vadd.f32 %v305, %v525
        %v527 = vpop.f32.mrf.mxu0
        %v528 = vadd.f32 %v305, %v527
        %529 = vmatmul.bf16.gmra.mxu0 %v385
        %v530 = vpop.f32.mrf.mxu0
        %v531 = vadd.f32 %v305, %v530
        %v532 = vpop.f32.mrf.mxu0
        %v533 = vadd.f32 %v305, %v532
        %534 = vmatmul.bf16.gmra.mxu0 %v386
        %v535 = vpop.f32.mrf.mxu0
        %v536 = vadd.f32 %v305, %v535
        %v537 = vpop.f32.mrf.mxu0
        %v538 = vadd.f32 %v305, %v537
        %539 = vdwg.mxu0
        %v540 = vmax.f32 %v461, 1e-06
        %v541 = vmax.f32 %v463, 1e-06
        %v542 = vmax.f32 %v466, 1e-06
        %v543 = vmax.f32 %v468, 1e-06
        %v544 = vmax.f32 %v471, 1e-06
        %v545 = vmax.f32 %v473, 1e-06
        %v546 = vmax.f32 %v476, 1e-06
        %v547 = vmax.f32 %v478, 1e-06
        %v548 = vmax.f32 %v481, 1e-06
        %v549 = vmax.f32 %v483, 1e-06
        %v550 = vmax.f32 %v486, 1e-06
        %v551 = vmax.f32 %v488, 1e-06
        %v552 = vmax.f32 %v491, 1e-06
        %v553 = vmax.f32 %v493, 1e-06
        %v554 = vmax.f32 %v496, 1e-06
        %v555 = vmax.f32 %v498, 1e-06
        %v556 = vmax.f32 %v501, 1e-06
        %v557 = vmax.f32 %v503, 1e-06
        %v558 = vmax.f32 %v506, 1e-06
        %v559 = vmax.f32 %v508, 1e-06
        %v560 = vmax.f32 %v511, 1e-06
        %v561 = vmax.f32 %v513, 1e-06
        %v562 = vmax.f32 %v516, 1e-06
        %v563 = vmax.f32 %v518, 1e-06
        %v564 = vmax.f32 %v521, 1e-06
        %v565 = vmax.f32 %v523, 1e-06
        %v566 = vmax.f32 %v526, 1e-06
        %v567 = vmax.f32 %v528, 1e-06
        %v568 = vmax.f32 %v531, 1e-06
        %v569 = vmax.f32 %v533, 1e-06
        %v570 = vmax.f32 %v536, 1e-06
        %v571 = vmax.f32 %v538, 1e-06
        %v572 = vld [vmem:[#allocation2] sm:$0x1]
        %v573 = vmul.f32 %v540, %v540
        %v574 = vmul.f32 %v541, %v541
        %v575 = vmul.f32 %v542, %v542
        %v576 = vmul.f32 %v543, %v543
        %v577 = vmul.f32 %v544, %v544
        %v578 = vmul.f32 %v545, %v545
        %v579 = vmul.f32 %v546, %v546
        %v580 = vmul.f32 %v547, %v547
        %v581 = vmul.f32 %v548, %v548
        %v582 = vmul.f32 %v549, %v549
        %v583 = vmul.f32 %v550, %v550
        %v584 = vmul.f32 %v551, %v551
        %v585 = vmul.f32 %v552, %v552
        %v586 = vmul.f32 %v553, %v553
        %v587 = vmul.f32 %v554, %v554
        %v588 = vmul.f32 %v555, %v555
        %v589 = vmul.f32 %v556, %v556
        %v590 = vmul.f32 %v557, %v557
        %v591 = vmul.f32 %v558, %v558
        %v592 = vmul.f32 %v559, %v559
        %v593 = vmul.f32 %v560, %v560
        %v594 = vmul.f32 %v561, %v561
        %v595 = vmul.f32 %v562, %v562
        %v596 = vmul.f32 %v563, %v563
        %v597 = vmul.f32 %v564, %v564
        %v598 = vmul.f32 %v565, %v565
        %v599 = vmul.f32 %v566, %v566
        %v600 = vmul.f32 %v567, %v567
        %v601 = vmul.f32 %v568, %v568
        %v602 = vmul.f32 %v569, %v569
        %v603 = vmul.f32 %v570, %v570
        %v604 = vmul.f32 %v571, %v571
        %v605 = vmul.f32 %v573, %v540
        %v606 = vmul.f32 %v574, %v541
        %v607 = vmul.f32 %v575, %v542
        %v608 = vmul.f32 %v576, %v543
        %v609 = vmul.f32 %v577, %v544
        %v610 = vmul.f32 %v578, %v545
        %v611 = vmul.f32 %v579, %v546
        %v612 = vmul.f32 %v580, %v547
        %v613 = vmul.f32 %v581, %v548
        %v614 = vmul.f32 %v582, %v549
        %v615 = vmul.f32 %v583, %v550
        %v616 = vmul.f32 %v584, %v551
        %v617 = vmul.f32 %v585, %v552
        %v618 = vmul.f32 %v586, %v553
        %v619 = vmul.f32 %v587, %v554
        %v620 = vmul.f32 %v588, %v555
        %v621 = vmul.f32 %v589, %v556
        %v622 = vmul.f32 %v590, %v557
        %v623 = vmul.f32 %v591, %v558
        %v624 = vmul.f32 %v592, %v559
        %v625 = vmul.f32 %v593, %v560
        %v626 = vmul.f32 %v594, %v561
        %v627 = vmul.f32 %v595, %v562
        %v628 = vmul.f32 %v596, %v563
        %v629 = vmul.f32 %v597, %v564
        %v630 = vmul.f32 %v598, %v565
        %v631 = vmul.f32 %v599, %v566
        %v632 = vmul.f32 %v600, %v567
        %v633 = vmul.f32 %v601, %v568
        %v634 = vmul.f32 %v602, %v569
        %v635 = vmul.f32 %v603, %v570
        %v636 = vmul.f32 %v604, %v571
        %v637 = vadd.f32 %v605, %v606
        %v638 = vadd.f32 %v637, %v607
        %v639 = vadd.f32 %v638, %v608
        %v640 = vadd.f32 %v639, %v609
        %v641 = vadd.f32 %v640, %v610
        %v642 = vadd.f32 %v641, %v611
        %v643 = vadd.f32 %v642, %v612
        %v644 = vadd.f32 %v643, %v613
        %v645 = vadd.f32 %v644, %v614
        %v646 = vadd.f32 %v645, %v615
        %v647 = vadd.f32 %v646, %v616
        %v648 = vadd.f32 %v647, %v617
        %v649 = vadd.f32 %v648, %v618
        %v650 = vadd.f32 %v649, %v619
        %v651 = vadd.f32 %v650, %v620
        %v652 = vadd.f32 %v651, %v621
        %v653 = vadd.f32 %v652, %v622
        %v654 = vadd.f32 %v653, %v623
        %v655 = vadd.f32 %v654, %v624
        %v656 = vadd.f32 %v655, %v625
        %v657 = vadd.f32 %v656, %v626
        %v658 = vadd.f32 %v657, %v627
        %v659 = vadd.f32 %v658, %v628
        %v660 = vadd.f32 %v659, %v629
        %v661 = vadd.f32 %v660, %v630
        %v662 = vadd.f32 %v661, %v631
        %v663 = vadd.f32 %v662, %v632
        %v664 = vadd.f32 %v663, %v633
        %v665 = vadd.f32 %v664, %v634
        %v666 = vadd.f32 %v665, %v635
        %v667 = vadd.f32 %v666, %v636
        %v668 = vrot.slane %v667, 4
        %v669 = vadd.f32 %v667, %v668
        %v670 = vrot.slane %v669, 2
        %v671 = vadd.f32 %v669, %v670
        %v672 = vrot.slane %v671, 1
        %v673 = vadd.f32 %v671, %v672
        %v674 = vadd.f32 %v572, %v673
        %675 = vst [vmem:[#allocation2] sm:$0x1] %v674
        // Predicated region
        $region45: #{gemnet_forward.1} parent=39 // pred_check
          %p676 = pneg %p250
        $region46: #{gemnet_forward.1} parent=39 // pred_check_branch
          %678 = sbr.rel (%p676) target = $region48
        $region47: #{gemnet_forward.1} parent=39 // pred_region
          %v679 = vld [vmem:[#allocation2] sm:$0x1]
          %v680 = vmul.f32 %v679, 0.00390625
          %v681 = vmax.f32 %v680, 1e-30
          %v682 = vlog2.pop %v681
          %v683 = vmul.f32 %v682, 0.6931472
          %v684 = vmul.f32 %v683, 0.33333334
          %v685 = vmul.f32 %v684, 1.442695
          %v686 = vpow.pop %v685
          %v687 = vld [vmem:[%s3] sm:$0xff]
          %v688 = vld [vmem:[%s3 + $0x8] sm:$0xff]
          %v689 = vld [vmem:[%s3 + $0x10] sm:$0xff]
          %v690 = vld [vmem:[%s3 + $0x18] sm:$0xff]
          %v691 = vld [vmem:[%s3 + $0x20] sm:$0xff]
          %v692 = vld [vmem:[%s3 + $0x28] sm:$0xff]
          %v693 = vld [vmem:[%s3 + $0x30] sm:$0xff]
          %v694 = vld [vmem:[%s3 + $0x38] sm:$0xff]
          %v695 = vld [vmem:[%s3 + $0x40] sm:$0xff]
          %v696 = vld [vmem:[%s3 + $0x48] sm:$0xff]
          %v697 = vld [vmem:[%s3 + $0x50] sm:$0xff]
          %v698 = vld [vmem:[%s3 + $0x58] sm:$0xff]
          %v699 = vld [vmem:[%s3 + $0x60] sm:$0xff]
          %v700 = vld [vmem:[%s3 + $0x68] sm:$0xff]
          %v701 = vld [vmem:[%s3 + $0x70] sm:$0xff]
          %v702 = vld [vmem:[%s3 + $0x78] sm:$0xff]
          %v703 = vld [vmem:[%s4] sm:$0x1]
          %704 = vmatpush.msra.mxu0 %v702
          %705 = vmatpush.msra.mxu0 %v701
          %706 = vmatpush.msra.mxu0 %v700
          %707 = vmatpush.msra.mxu0 %v699
          %708 = vmatpush.msra.mxu0 %v698
          %709 = vmatpush.msra.mxu0 %v697
          %710 = vmatpush.msra.mxu0 %v696
          %711 = vmatpush.msra.mxu0 %v695
          %712 = vmatpush.msra.mxu0 %v694
          %713 = vmatpush.msra.mxu0 %v693
          %714 = vmatpush.msra.mxu0 %v692
          %715 = vmatpush.msra.mxu0 %v691
          %716 = vmatpush.msra.mxu0 %v690
          %717 = vmatpush.msra.mxu0 %v689
          %718 = vmatpush.msra.mxu0 %v688
          %719 = vmatpush.msra.mxu0 %v687
          %720 = vmatmul.f32.gmra.mxu0 %v686
          %v721 = vpop.f32.mrf.mxu0
          %v722 = vadd.f32 %v703, %v721
          %723 = vdwg.mxu0
          %724 = vst [vmem:[%s239] sm:$0x1] %v722
        $region48: #{gemnet_forward.1} parent=39 // pred_fallthru
          _
        %s725 = sand.u32 %s151, 1
        %s726 = scalar_lea.sflag [#allocation4], %s725
        %s727 = sand.u32 %s151, 1
        %s728 = scalar_lea.vmem [#allocation3], %s727
        // Predicated region
        $region49: #{gemnet_forward.1} parent=39 // pred_check
          %p729 = pneg %p161
        $region50: #{gemnet_forward.1} parent=39 // pred_check_branch
          %731 = sbr.rel (%p729) target = $region52
        $region51: #{gemnet_forward.1} parent=39 // pred_region
          %733 = vsyncadd %s726, 0
          %s734 = scalar_lea.hbm %s5, %s23
          %s736 = sshll.u32 %s728, 4
          %s737 = int_to_ptr.vmem [resolvable:$true] %s736
          %s738 = sshll.u32 %s734, 4
          %s739 = int_to_ptr.hbm [resolvable:$true] %s738
          %741 = dma.vmem_to_hbm [thread:$0]  %s737, 16, %s739, %s726
        $region52: #{gemnet_forward.1} parent=39 // pred_fallthru
          _
      $region40: #{gemnet_forward.1} parent=5 // pred_fallthru
        _
      %p742 = scmp.le.s32.totalorder 2, %s14
      // Predicated region
      $region53: #{gemnet_forward.1} parent=5 // pred_check
        %p743 = pneg %p742
      $region54: #{gemnet_forward.1} parent=5 // pred_check_branch
        %745 = sbr.rel (%p743) target = $region56
      $region55: #{gemnet_forward.1} parent=5 // pred_region
        %s746 = ssub.s32 %s14, 2
        // Predicated region
        $region57: #{gemnet_forward.1} parent=55 // pred_check
          %p747 = pneg %p167
        $region58: #{gemnet_forward.1} parent=55 // pred_check_branch
          %749 = sbr.rel (%p747) target = $region60
        $region59: #{gemnet_forward.1} parent=55 // pred_region
          %s750 = sand.u32 %s152, 1
          %s751 = scalar_lea.sflag [#allocation4], %s750
          %s752 = sand.u32 %s152, 1
          %s753 = scalar_lea.vmem [#allocation3], %s752
          %755 = dma.done %s751, 16
        $region60: #{gemnet_forward.1} parent=55 // pred_fallthru
          _
      $region56: #{gemnet_forward.1} parent=5 // pred_fallthru
        _
    $region6: #{gemnet_forward.1} parent=1 // loop_footer
      %s18 = sadd.s32 1, %s14
    $region7: #{gemnet_forward.1} parent=1 // loop_footer_branch
      %13 = sbr.rel target = $region3
    $region8: #{gemnet_forward.1} parent=1 // loop_exit
      _
    %756 = vsyncpa [#allocation4], 1
    %s757 = scalar_lea.sflag [#allocation4], 1
    %758 = vsyncpa %s757, 1

</llo_original>
